<compile_context>
chip_gen: v7x
topology: tpu7x:2x2x1
jax: 0.10.0
libtpu: 0.0.40
codegen_flags: <defaults>
</compile_context>

<pallas_src>
import math

import jax
import jax.numpy as jnp
from jax.experimental import pallas as pl
from jax.experimental.pallas import tpu as pltpu


def task_enc_kernel(aug_ref, w1_ref, b1_ref, w2_ref, b2_ref, out_ref):
    # hidden = relu(aug_packed @ W1_blockdiag + b1_tiled)
    h = jnp.dot(aug_ref[...], w1_ref[...], preferred_element_type=jnp.float32)
    h = jnp.maximum(h + b1_ref[...], 0.0)
    # out = hidden @ W2_blockdiag + b2_tiled
    o = jnp.dot(h, w2_ref[...], preferred_element_type=jnp.float32)
    out_ref[...] = (o + b2_ref[...]).astype(out_ref.dtype)


def _round_up(x, m):
    return ((x + m - 1) // m) * m


def _pack_factor(n_xyaug, n_hid, n_out):
    """Smallest P that makes both the packed input (P*n_xyaug) and packed
    output (P*n_out) widths multiples of 128 lanes."""
    p_in = 128 // math.gcd(128, n_xyaug)
    p_out = 128 // math.gcd(128, n_out)
    p = (p_in * p_out) // math.gcd(p_in, p_out)
    # Guard: keep the replicated block-diagonal weights small (< ~4 MiB).
    w_bytes = 4 * p * p * (n_xyaug * n_hid + n_hid * n_out)
    if w_bytes > (4 << 20):
        return 1  # fall back to the un-packed (lane-sparse but correct) path
    return p


def task_enc_forward(aug, w1, b1, w2, b2, *, block_packed_rows=512):
    """aug: (..., n_xyaug). w1: (n_xyaug, n_hid), b1: (n_hid,),
    w2: (n_hid, n_out), b2: (n_out,).  Returns (..., n_out)."""
    lead = aug.shape[:-1]
    n_xyaug = aug.shape[-1]
    n_hid = w1.shape[1]
    n_out = w2.shape[1]

    P = _pack_factor(n_xyaug, n_hid, n_out)

    aug2d = aug.reshape(-1, n_xyaug)
    n_rows = aug2d.shape[0]

    # Pad rows so they (a) fill whole packed rows and (b) fill whole tiles.
    n_packed = pl.cdiv(n_rows, P)
    tm = min(block_packed_rows, _round_up(n_packed, 8))  # multiple of 8 sublanes
    n_packed_pad = _round_up(n_packed, tm)
    n_rows_pad = n_packed_pad * P
    if n_rows_pad != n_rows:
        aug2d = jnp.pad(aug2d, ((0, n_rows_pad - n_rows), (0, 0)))

    # Free row-major reshape: 16 samples per 128-lane packed row.
    aug_packed = aug2d.reshape(n_packed_pad, P * n_xyaug)

    # Block-diagonal weight replication (built once; ~hundreds of KiB).
    eye = jnp.eye(P, dtype=w1.dtype)
    w1_bd = jnp.kron(eye, w1)                       # (P*n_xyaug, P*n_hid)
    w2_bd = jnp.kron(eye, w2)                       # (P*n_hid,   P*n_out)
    b1_bd = jnp.tile(b1, P).reshape(1, P * n_hid)
    b2_bd = jnp.tile(b2, P).reshape(1, P * n_out)

    grid = (n_packed_pad // tm,)

    out_packed = pl.pallas_call(
        task_enc_kernel,
        out_shape=jax.ShapeDtypeStruct((n_packed_pad, P * n_out), aug.dtype),
        grid=grid,
        in_specs=[
            pl.BlockSpec((tm, P * n_xyaug), lambda i: (i, 0)),
            pl.BlockSpec((P * n_xyaug, P * n_hid), lambda i: (0, 0)),
            pl.BlockSpec((1, P * n_hid), lambda i: (0, 0)),
            pl.BlockSpec((P * n_hid, P * n_out), lambda i: (0, 0)),
            pl.BlockSpec((1, P * n_out), lambda i: (0, 0)),
        ],
        out_specs=pl.BlockSpec((tm, P * n_out), lambda i: (i, 0)),
        compiler_params=pltpu.CompilerParams(
            dimension_semantics=("parallel",)),
    )(aug_packed, w1_bd, b1_bd, w2_bd, b2_bd)

    # Free row-major un-pack, drop padding rows.
    out2d = out_packed.reshape(n_rows_pad, n_out)[:n_rows]
    return out2d.reshape(*lead, n_out)


def init_task_enc_params(key, n_xyaug, n_hid, n_out, dtype=jnp.float32):
    """Kaiming-normal (fan_in, gain=sqrt(2)) weights, zero biases — matches
    init.kaiming_normal_(w, mode='fan_in') + init.constant_(b, 0)."""
    k1, k2 = jax.random.split(key)
    std1 = (2.0 / n_xyaug) ** 0.5
    std2 = (2.0 / n_hid) ** 0.5
    # stored transposed relative to PyTorch: (in, out)
    w1 = (jax.random.normal(k1, (n_xyaug, n_hid), dtype=jnp.float32) * std1).astype(dtype)
    w2 = (jax.random.normal(k2, (n_hid, n_out), dtype=jnp.float32) * std2).astype(dtype)
    b1 = jnp.zeros((n_hid,), dtype=dtype)
    b2 = jnp.zeros((n_out,), dtype=dtype)
    return w1, b1, w2, b2


if __name__ == "__main__":
    key = jax.random.PRNGKey(0)
    k_in, k_in2, k_params = jax.random.split(key, 3)

    # Small shapes consistent with TaskEnc: n_xyaug=8, n_hid=32, n_out=16,
    # batch of 2 tasks x 8 augmented samples each.
    batch, seq, n_xyaug, n_hid, n_out = 2, 8, 8, 32, 16
    w1, b1, w2, b2 = init_task_enc_params(k_params, n_xyaug, n_hid, n_out)

    def ref_fn(a):
        return jnp.maximum(a @ w1 + b1, 0.0) @ w2 + b2

    # --- small case (single tile, exercises packing + row padding) ---
    aug = jax.random.normal(k_in, (batch, seq, n_xyaug), dtype=jnp.float32)
    out = jax.block_until_ready(task_enc_forward(aug, w1, b1, w2, b2))
    assert out.shape == (batch, seq, n_out)
    assert jnp.allclose(out, ref_fn(aug), atol=1e-4, rtol=1e-4)

    # --- larger case (multiple grid tiles, pipelined path) ---
    aug_big = jax.random.normal(k_in2, (16384, n_xyaug), dtype=jnp.float32)
    out_big = jax.block_until_ready(task_enc_forward(aug_big, w1, b1, w2, b2))
    assert out_big.shape == (16384, n_out)
    assert jnp.allclose(out_big, ref_fn(aug_big), atol=1e-4, rtol=1e-4)

    print("KERNEL_OK")
</pallas_src>

<mosaic_0001>
module attributes {stable_mosaic.version = 11 : i64} {
  func.func @task_enc_kernel(%arg0: i32, %arg1: memref<8x128xf32, #tpu.memory_space<vmem>>, %arg2: memref<128x512xf32, #tpu.memory_space<vmem>>, %arg3: memref<1x512xf32, #tpu.memory_space<vmem>>, %arg4: memref<512x256xf32, #tpu.memory_space<vmem>>, %arg5: memref<1x256xf32, #tpu.memory_space<vmem>>, %arg6: memref<8x256xf32, #tpu.memory_space<vmem>>) attributes {dimension_semantics = [#tpu.dimension_semantics<parallel>], iteration_bounds = array<i64: 1>, scalar_prefetch = 0 : i64, scratch_operands = 0 : i64, tpu.core_type = #tpu.core_type<tc>, window_params = [{transform_indices = @transform_0, window_bounds = array<i64: 8, 128>}, {pipeline_mode = #tpu.pipeline_mode<synchronous>, transform_indices = @transform_1, window_bounds = array<i64: 128, 512>}, {pipeline_mode = #tpu.pipeline_mode<synchronous>, transform_indices = @transform_2, window_bounds = array<i64: 1, 512>}, {pipeline_mode = #tpu.pipeline_mode<synchronous>, transform_indices = @transform_3, window_bounds = array<i64: 512, 256>}, {pipeline_mode = #tpu.pipeline_mode<synchronous>, transform_indices = @transform_4, window_bounds = array<i64: 1, 256>}, {transform_indices = @transform_5, window_bounds = array<i64: 8, 256>}]} {
    %c0 = arith.constant 0 : index
    %c0_0 = arith.constant 0 : index
    %0 = vector.load %arg1[%c0, %c0_0] : memref<8x128xf32, #tpu.memory_space<vmem>>, vector<8x128xf32>
    %c0_1 = arith.constant 0 : index
    %c0_2 = arith.constant 0 : index
    %1 = vector.load %arg2[%c0_1, %c0_2] : memref<128x512xf32, #tpu.memory_space<vmem>>, vector<128x512xf32>
    %cst = arith.constant dense<0.000000e+00> : vector<8x512xf32>
    %2 = tpu.matmul %0, %1, %cst {dimension_numbers = #tpu.dot_dimension_numbers<[1], [0], [0], [1], [0, 0, 1, 1], [], []>} : vector<8x128xf32>, vector<128x512xf32>, vector<8x512xf32> -> vector<8x512xf32>
    %c0_3 = arith.constant 0 : index
    %c0_4 = arith.constant 0 : index
    %3 = vector.load %arg3[%c0_3, %c0_4] : memref<1x512xf32, #tpu.memory_space<vmem>>, vector<1x512xf32>
    %4 = vector.broadcast %3 : vector<1x512xf32> to vector<8x512xf32>
    %5 = arith.addf %2, %4 : vector<8x512xf32>
    %cst_5 = arith.constant 0.000000e+00 : f32
    %6 = vector.broadcast %cst_5 : f32 to vector<8x512xf32>
    %7 = arith.maximumf %5, %6 : vector<8x512xf32>
    %c0_6 = arith.constant 0 : index
    %c0_7 = arith.constant 0 : index
    %8 = vector.load %arg4[%c0_6, %c0_7] : memref<512x256xf32, #tpu.memory_space<vmem>>, vector<512x256xf32>
    %cst_8 = arith.constant dense<0.000000e+00> : vector<8x256xf32>
    %9 = tpu.matmul %7, %8, %cst_8 {dimension_numbers = #tpu.dot_dimension_numbers<[1], [0], [0], [1], [0, 0, 1, 1], [], []>} : vector<8x512xf32>, vector<512x256xf32>, vector<8x256xf32> -> vector<8x256xf32>
    %c0_9 = arith.constant 0 : index
    %c0_10 = arith.constant 0 : index
    %10 = vector.load %arg5[%c0_9, %c0_10] : memref<1x256xf32, #tpu.memory_space<vmem>>, vector<1x256xf32>
    %11 = vector.broadcast %10 : vector<1x256xf32> to vector<8x256xf32>
    %12 = arith.addf %9, %11 : vector<8x256xf32>
    %c0_11 = arith.constant 0 : index
    %c0_12 = arith.constant 0 : index
    %13 = vector.load %arg6[%c0_11, %c0_12] : memref<8x256xf32, #tpu.memory_space<vmem>>, vector<8x256xf32>
    tpu.vector_store %arg6[%c0_11, %c0_12], %12 {strides = array<i32>} : memref<8x256xf32, #tpu.memory_space<vmem>>, vector<8x256xf32>,
    return
  }
  func.func @transform_0(%arg0: i32) -> (i32, i32) {
    %c0_i32 = arith.constant 0 : i32
    %c0_i32_0 = arith.constant 0 : i32
    return %arg0, %c0_i32 : i32, i32
  }
  func.func @transform_1(%arg0: i32) -> (i32, i32) {
    %c0_i32 = arith.constant 0 : i32
    %c0_i32_0 = arith.constant 0 : i32
    %c0_i32_1 = arith.constant 0 : i32
    return %c0_i32, %c0_i32_0 : i32, i32
  }
  func.func @transform_2(%arg0: i32) -> (i32, i32) {
    %c0_i32 = arith.constant 0 : i32
    %c0_i32_0 = arith.constant 0 : i32
    %c0_i32_1 = arith.constant 0 : i32
    return %c0_i32, %c0_i32_0 : i32, i32
  }
  func.func @transform_3(%arg0: i32) -> (i32, i32) {
    %c0_i32 = arith.constant 0 : i32
    %c0_i32_0 = arith.constant 0 : i32
    %c0_i32_1 = arith.constant 0 : i32
    return %c0_i32, %c0_i32_0 : i32, i32
  }
  func.func @transform_4(%arg0: i32) -> (i32, i32) {
    %c0_i32 = arith.constant 0 : i32
    %c0_i32_0 = arith.constant 0 : i32
    %c0_i32_1 = arith.constant 0 : i32
    return %c0_i32, %c0_i32_0 : i32, i32
  }
  func.func @transform_5(%arg0: i32) -> (i32, i32) {
    %c0_i32 = arith.constant 0 : i32
    %c0_i32_0 = arith.constant 0 : i32
    return %arg0, %c0_i32 : i32, i32
  }
}

</mosaic_0001>

<llo_original>
// kernel: tpu_custom_call.1
$region0: #{tpu_custom_call.1}
  #allocation0 [shape = 'u32[]', space=smem, size = 0x4, offset = 0x4, fixed_abs, tag = 'smem constant byte address 0x4 - core index']
  #allocation1 [shape = 'u32[144,128]{1,0:T(1,128)}', space=vmem, size = 0x12000, scoped, tag = 'internal scratch']
  %s0 = inlined_call_operand.hbm [shape: f32[8,128], index: 0, kind: input, shape index: {}]
  %s1 = inlined_call_operand.hbm [shape: f32[128,512], index: 1, kind: input, shape index: {}]
  %s2 = inlined_call_operand.vmem [shape: f32[1,512], index: 2, kind: input, shape index: {}]
  %s3 = inlined_call_operand.hbm [shape: f32[512,256], index: 3, kind: input, shape index: {}]
  %s4 = inlined_call_operand.vmem [shape: f32[1,256], index: 4, kind: input, shape index: {}]
  %s5 = inlined_call_operand.hbm [shape: f32[8,256], index: 5, kind: output, shape index: {}]
  %s6 = sld [smem:[#allocation0]]
  $region42: #{tpu_custom_call.1} parent=0
    _
  %s8 = ssub.s32 1, %s6
  %s9 = scalar_select 0, %s8, %s6
  $region1: #{tpu_custom_call.1} parent=0
    #allocation2 [shape = 'u8[4096]{0}', space=vmem, size = 0x1000, scoped, tag = 'input window, operand 0, single buffered']
    #allocation3 [shape = 's32[1]{0}', space=sflag, size = 0x4, scoped, tag = 'scoped memory for tpu_custom_call.1']
    #allocation4 [shape = 's32[1]{0}', space=sflag, size = 0x4, scoped, tag = 'scoped memory for tpu_custom_call.1']
    #allocation5 [shape = 'u8[262144]{0}', space=vmem, size = 0x40000, scoped, tag = 'input window, operand 1, single buffered']
    #allocation6 [shape = 's32[1]{0}', space=sflag, size = 0x4, scoped, tag = 'scoped memory for tpu_custom_call.1']
    #allocation7 [shape = 'u8[524288]{0}', space=vmem, size = 0x80000, scoped, tag = 'input window, operand 3, single buffered']
    #allocation8 [shape = 'u8[8192]{0}', space=vmem, size = 0x2000, scoped, tag = 'output window, operand 0, single buffered']
    %10 = vsyncpa [#allocation3], 0
    %11 = vsyncpa [#allocation6], 0
    %12 = vsyncpa [#allocation4], 0
    // Predicated region
    $region2: #{tpu_custom_call.1} parent=1 // pred_check
      _
    $region3: #{tpu_custom_call.1} parent=1 // pred_check_branch
      %14 = sbr.rel (0) target = $region5
    $region4: #{tpu_custom_call.1} parent=1 // pred_region
      %s16 = ssub.s32 128, 128
      %17 = vsyncadd [#allocation3], %s16
      %s19 = sshll.u32 [#allocation2], 4
      %s20 = int_to_ptr.vmem [resolvable:$true] %s19
      %22 = dma.hbm_to_vmem [thread:$0]  %s0, 128, %s20, [#allocation3]
    $region5: #{tpu_custom_call.1} parent=1 // pred_fallthru
      _
    // Predicated region
    $region6: #{tpu_custom_call.1} parent=1 // pred_check
      _
    $region7: #{tpu_custom_call.1} parent=1 // pred_check_branch
      %24 = sbr.rel (0) target = $region9
    $region8: #{tpu_custom_call.1} parent=1 // pred_region
      %s26 = ssub.s32 8192, 8192
      %27 = vsyncadd [#allocation6], %s26
      %s28 = sshll.u32 [#allocation5], 4
      %s29 = int_to_ptr.vmem [resolvable:$true] %s28
      %34 = dma.hbm_to_vmem [thread:$0]  %s1, 8192, %s29, [#allocation6], 512, 512, 32
    $region9: #{tpu_custom_call.1} parent=1 // pred_fallthru
      _
    // Predicated region
    $region10: #{tpu_custom_call.1} parent=1 // pred_check
      _
    $region11: #{tpu_custom_call.1} parent=1 // pred_check_branch
      %36 = sbr.rel (0) target = $region13
    $region12: #{tpu_custom_call.1} parent=1 // pred_region
      _
    $region13: #{tpu_custom_call.1} parent=1 // pred_fallthru
      _
    // Predicated region
    $region14: #{tpu_custom_call.1} parent=1 // pred_check
      _
    $region15: #{tpu_custom_call.1} parent=1 // pred_check_branch
      %38 = sbr.rel (0) target = $region17
    $region16: #{tpu_custom_call.1} parent=1 // pred_region
      %s40 = ssub.s32 16384, 16384
      %41 = vsyncadd [#allocation6], %s40
      %s42 = sshll.u32 [#allocation7], 4
      %s43 = int_to_ptr.vmem [resolvable:$true] %s42
      %48 = dma.hbm_to_vmem [thread:$0]  %s3, 16384, %s43, [#allocation6], 256, 256, 16
    $region17: #{tpu_custom_call.1} parent=1 // pred_fallthru
      _
    // Predicated region
    $region18: #{tpu_custom_call.1} parent=1 // pred_check
      _
    $region19: #{tpu_custom_call.1} parent=1 // pred_check_branch
      %50 = sbr.rel (0) target = $region21
    $region20: #{tpu_custom_call.1} parent=1 // pred_region
      _
    $region21: #{tpu_custom_call.1} parent=1 // pred_fallthru
      _
    // Predicated region
    $region22: #{tpu_custom_call.1} parent=1 // pred_check
      _
    $region23: #{tpu_custom_call.1} parent=1 // pred_check_branch
      %52 = sbr.rel (0) target = $region25
    $region24: #{tpu_custom_call.1} parent=1 // pred_region
      %53 = dma.done [#allocation3], 128
    $region25: #{tpu_custom_call.1} parent=1 // pred_fallthru
      _
    // Predicated region
    $region26: #{tpu_custom_call.1} parent=1 // pred_check
      _
    $region27: #{tpu_custom_call.1} parent=1 // pred_check_branch
      %55 = sbr.rel (0) target = $region29
    $region28: #{tpu_custom_call.1} parent=1 // pred_region
      %56 = dma.done [#allocation6], 8192
    $region29: #{tpu_custom_call.1} parent=1 // pred_fallthru
      _
    // Predicated region
    $region30: #{tpu_custom_call.1} parent=1 // pred_check
      _
    $region31: #{tpu_custom_call.1} parent=1 // pred_check_branch
      %58 = sbr.rel (0) target = $region33
    $region32: #{tpu_custom_call.1} parent=1 // pred_region
      %59 = dma.done [#allocation6], 16384
    $region33: #{tpu_custom_call.1} parent=1 // pred_fallthru
      _
    %v60 = vld [vmem:[#allocation2] sm:$0xff]
    %v61 = vld [vmem:[#allocation5] sm:$0xff]
    %v62 = vld [vmem:[#allocation5 + $0x8] sm:$0xff]
    %v63 = vld [vmem:[#allocation5 + $0x10] sm:$0xff]
    %v64 = vld [vmem:[#allocation5 + $0x18] sm:$0xff]
    %v65 = vld [vmem:[#allocation5 + $0x20] sm:$0xff]
    %v66 = vld [vmem:[#allocation5 + $0x28] sm:$0xff]
    %v67 = vld [vmem:[#allocation5 + $0x30] sm:$0xff]
    %v68 = vld [vmem:[#allocation5 + $0x38] sm:$0xff]
    %v69 = vld [vmem:[#allocation5 + $0x40] sm:$0xff]
    %v70 = vld [vmem:[#allocation5 + $0x48] sm:$0xff]
    %v71 = vld [vmem:[#allocation5 + $0x50] sm:$0xff]
    %v72 = vld [vmem:[#allocation5 + $0x58] sm:$0xff]
    %v73 = vld [vmem:[#allocation5 + $0x60] sm:$0xff]
    %v74 = vld [vmem:[#allocation5 + $0x68] sm:$0xff]
    %v75 = vld [vmem:[#allocation5 + $0x70] sm:$0xff]
    %v76 = vld [vmem:[#allocation5 + $0x78] sm:$0xff]
    %v77 = vld [vmem:[#allocation5 + $0x80] sm:$0xff]
    %v78 = vld [vmem:[#allocation5 + $0x88] sm:$0xff]
    %v79 = vld [vmem:[#allocation5 + $0x90] sm:$0xff]
    %v80 = vld [vmem:[#allocation5 + $0x98] sm:$0xff]
    %v81 = vld [vmem:[#allocation5 + $0xa0] sm:$0xff]
    %v82 = vld [vmem:[#allocation5 + $0xa8] sm:$0xff]
    %v83 = vld [vmem:[#allocation5 + $0xb0] sm:$0xff]
    %v84 = vld [vmem:[#allocation5 + $0xb8] sm:$0xff]
    %v85 = vld [vmem:[#allocation5 + $0xc0] sm:$0xff]
    %v86 = vld [vmem:[#allocation5 + $0xc8] sm:$0xff]
    %v87 = vld [vmem:[#allocation5 + $0xd0] sm:$0xff]
    %v88 = vld [vmem:[#allocation5 + $0xd8] sm:$0xff]
    %v89 = vld [vmem:[#allocation5 + $0xe0] sm:$0xff]
    %v90 = vld [vmem:[#allocation5 + $0xe8] sm:$0xff]
    %v91 = vld [vmem:[#allocation5 + $0xf0] sm:$0xff]
    %v92 = vld [vmem:[#allocation5 + $0xf8] sm:$0xff]
    %v93 = vld [vmem:[#allocation5 + $0x100] sm:$0xff]
    %v94 = vld [vmem:[#allocation5 + $0x108] sm:$0xff]
    %v95 = vld [vmem:[#allocation5 + $0x110] sm:$0xff]
    %v96 = vld [vmem:[#allocation5 + $0x118] sm:$0xff]
    %v97 = vld [vmem:[#allocation5 + $0x120] sm:$0xff]
    %v98 = vld [vmem:[#allocation5 + $0x128] sm:$0xff]
    %v99 = vld [vmem:[#allocation5 + $0x130] sm:$0xff]
    %v100 = vld [vmem:[#allocation5 + $0x138] sm:$0xff]
    %v101 = vld [vmem:[#allocation5 + $0x140] sm:$0xff]
    %v102 = vld [vmem:[#allocation5 + $0x148] sm:$0xff]
    %v103 = vld [vmem:[#allocation5 + $0x150] sm:$0xff]
    %v104 = vld [vmem:[#allocation5 + $0x158] sm:$0xff]
    %v105 = vld [vmem:[#allocation5 + $0x160] sm:$0xff]
    %v106 = vld [vmem:[#allocation5 + $0x168] sm:$0xff]
    %v107 = vld [vmem:[#allocation5 + $0x170] sm:$0xff]
    %v108 = vld [vmem:[#allocation5 + $0x178] sm:$0xff]
    %v109 = vld [vmem:[#allocation5 + $0x180] sm:$0xff]
    %v110 = vld [vmem:[#allocation5 + $0x188] sm:$0xff]
    %v111 = vld [vmem:[#allocation5 + $0x190] sm:$0xff]
    %v112 = vld [vmem:[#allocation5 + $0x198] sm:$0xff]
    %v113 = vld [vmem:[#allocation5 + $0x1a0] sm:$0xff]
    %v114 = vld [vmem:[#allocation5 + $0x1a8] sm:$0xff]
    %v115 = vld [vmem:[#allocation5 + $0x1b0] sm:$0xff]
    %v116 = vld [vmem:[#allocation5 + $0x1b8] sm:$0xff]
    %v117 = vld [vmem:[#allocation5 + $0x1c0] sm:$0xff]
    %v118 = vld [vmem:[#allocation5 + $0x1c8] sm:$0xff]
    %v119 = vld [vmem:[#allocation5 + $0x1d0] sm:$0xff]
    %v120 = vld [vmem:[#allocation5 + $0x1d8] sm:$0xff]
    %v121 = vld [vmem:[#allocation5 + $0x1e0] sm:$0xff]
    %v122 = vld [vmem:[#allocation5 + $0x1e8] sm:$0xff]
    %v123 = vld [vmem:[#allocation5 + $0x1f0] sm:$0xff]
    %v124 = vld [vmem:[#allocation5 + $0x1f8] sm:$0xff]
    %v125 = vld [vmem:[%s2] sm:$0xf]
    %v127 = vlaneseq
    %v128 = vshrl.u32 %v127, 7
    %v129 = vsub.s32 0, %v128
    %v130 = vrot.slane %v125, %v129
    %v131 = vlaneseq
    %v132 = vshrl.u32 %v131, 7
    %v133 = vsub.s32 1, %v132
    %v134 = vrot.slane %v125, %v133
    %v135 = vlaneseq
    %v136 = vshrl.u32 %v135, 7
    %v137 = vsub.s32 2, %v136
    %v138 = vrot.slane %v125, %v137
    %v139 = vlaneseq
    %v140 = vshrl.u32 %v139, 7
    %v141 = vsub.s32 3, %v140
    %v142 = vrot.slane %v125, %v141
    %147 = vmatprep.subr.mxu0 %v62
    %148 = vmatpush1.msra.mxu0 %v61
    %149 = vmatprep.subr.mxu0 %v66
    %150 = vmatpush1.msra.mxu0 %v65
    %151 = vmatprep.subr.mxu0 %v70
    %152 = vmatpush1.msra.mxu0 %v69
    %153 = vmatprep.subr.mxu0 %v74
    %154 = vmatpush1.msra.mxu0 %v73
    %155 = vmatprep.subr.mxu0 %v78
    %156 = vmatpush1.msra.mxu0 %v77
    %157 = vmatprep.subr.mxu0 %v82
    %158 = vmatpush1.msra.mxu0 %v81
    %159 = vmatprep.subr.mxu0 %v86
    %160 = vmatpush1.msra.mxu0 %v85
    %161 = vmatprep.subr.mxu0 %v90
    %162 = vmatpush1.msra.mxu0 %v89
    %163 = vmatprep.subr.mxu0 %v94
    %164 = vmatpush1.msra.mxu0 %v93
    %165 = vmatprep.subr.mxu0 %v98
    %166 = vmatpush1.msra.mxu0 %v97
    %167 = vmatprep.subr.mxu0 %v102
    %168 = vmatpush1.msra.mxu0 %v101
    %169 = vmatprep.subr.mxu0 %v106
    %170 = vmatpush1.msra.mxu0 %v105
    %171 = vmatprep.subr.mxu0 %v110
    %172 = vmatpush1.msra.mxu0 %v109
    %173 = vmatprep.subr.mxu0 %v114
    %174 = vmatpush1.msra.mxu0 %v113
    %175 = vmatprep.subr.mxu0 %v118
    %176 = vmatpush1.msra.mxu0 %v117
    %177 = vmatprep.subr.mxu0 %v122
    %178 = vmatpush1.msra.mxu0 %v121
    %179 = vmatprep.subr.mxu0 0.0
    %180 = vmatpush1.msra.mxu0 0.0
    %181 = vmatprep.subr.mxu0 0.0
    %182 = vmatpush1.msra.mxu0 0.0
    %183 = vmatprep.subr.mxu0 0.0
    %184 = vmatpush1.msra.mxu0 0.0
    %185 = vmatprep.subr.mxu0 0.0
    %186 = vmatpush1.msra.mxu0 0.0
    %187 = vmatprep.subr.mxu0 0.0
    %188 = vmatpush1.msra.mxu0 0.0
    %189 = vmatprep.subr.mxu0 0.0
    %190 = vmatpush1.msra.mxu0 0.0
    %191 = vmatprep.subr.mxu0 0.0
    %192 = vmatpush1.msra.mxu0 0.0
    %193 = vmatprep.subr.mxu0 0.0
    %194 = vmatpush1.msra.mxu0 0.0
    %195 = vmatprep.subr.mxu0 0.0
    %196 = vmatpush1.msra.mxu0 0.0
    %197 = vmatprep.subr.mxu0 0.0
    %198 = vmatpush1.msra.mxu0 0.0
    %199 = vmatprep.subr.mxu0 0.0
    %200 = vmatpush1.msra.mxu0 0.0
    %201 = vmatprep.subr.mxu0 0.0
    %202 = vmatpush1.msra.mxu0 0.0
    %203 = vmatprep.subr.mxu0 0.0
    %204 = vmatpush1.msra.mxu0 0.0
    %205 = vmatprep.subr.mxu0 0.0
    %206 = vmatpush1.msra.mxu0 0.0
    %207 = vmatprep.subr.mxu0 0.0
    %208 = vmatpush1.msra.mxu0 0.0
    %209 = vmatprep.subr.mxu0 0.0
    %210 = vmatpush1.msra.mxu0 0.0
    %211 = vmatprep.mubr.f32.mxu0 0.0
    %212 = vmatmul.mubr.f32.gmra.mrb[0].mxu0 %v60
    %v213 = vpop.f32.mrb[0].mxu0
    %v214 = vadd.f32 %v130, %v213
    %v215 = vpop.f32.mrb[0].mxu0
    %v216 = vadd.f32 %v134, %v215
    %217 = vdwg.mxu0
    %218 = vmatprep.subr.mxu0 %v64
    %219 = vmatpush1.msra.mxu0 %v63
    %220 = vmatprep.subr.mxu0 %v68
    %221 = vmatpush1.msra.mxu0 %v67
    %222 = vmatprep.subr.mxu0 %v72
    %223 = vmatpush1.msra.mxu0 %v71
    %224 = vmatprep.subr.mxu0 %v76
    %225 = vmatpush1.msra.mxu0 %v75
    %226 = vmatprep.subr.mxu0 %v80
    %227 = vmatpush1.msra.mxu0 %v79
    %228 = vmatprep.subr.mxu0 %v84
    %229 = vmatpush1.msra.mxu0 %v83
    %230 = vmatprep.subr.mxu0 %v88
    %231 = vmatpush1.msra.mxu0 %v87
    %232 = vmatprep.subr.mxu0 %v92
    %233 = vmatpush1.msra.mxu0 %v91
    %234 = vmatprep.subr.mxu0 %v96
    %235 = vmatpush1.msra.mxu0 %v95
    %236 = vmatprep.subr.mxu0 %v100
    %237 = vmatpush1.msra.mxu0 %v99
    %238 = vmatprep.subr.mxu0 %v104
    %239 = vmatpush1.msra.mxu0 %v103
    %240 = vmatprep.subr.mxu0 %v108
    %241 = vmatpush1.msra.mxu0 %v107
    %242 = vmatprep.subr.mxu0 %v112
    %243 = vmatpush1.msra.mxu0 %v111
    %244 = vmatprep.subr.mxu0 %v116
    %245 = vmatpush1.msra.mxu0 %v115
    %246 = vmatprep.subr.mxu0 %v120
    %247 = vmatpush1.msra.mxu0 %v119
    %248 = vmatprep.subr.mxu0 %v124
    %249 = vmatpush1.msra.mxu0 %v123
    %250 = vmatprep.subr.mxu0 0.0
    %251 = vmatpush1.msra.mxu0 0.0
    %252 = vmatprep.subr.mxu0 0.0
    %253 = vmatpush1.msra.mxu0 0.0
    %254 = vmatprep.subr.mxu0 0.0
    %255 = vmatpush1.msra.mxu0 0.0
    %256 = vmatprep.subr.mxu0 0.0
    %257 = vmatpush1.msra.mxu0 0.0
    %258 = vmatprep.subr.mxu0 0.0
    %259 = vmatpush1.msra.mxu0 0.0
    %260 = vmatprep.subr.mxu0 0.0
    %261 = vmatpush1.msra.mxu0 0.0
    %262 = vmatprep.subr.mxu0 0.0
    %263 = vmatpush1.msra.mxu0 0.0
    %264 = vmatprep.subr.mxu0 0.0
    %265 = vmatpush1.msra.mxu0 0.0
    %266 = vmatprep.subr.mxu0 0.0
    %267 = vmatpush1.msra.mxu0 0.0
    %268 = vmatprep.subr.mxu0 0.0
    %269 = vmatpush1.msra.mxu0 0.0
    %270 = vmatprep.subr.mxu0 0.0
    %271 = vmatpush1.msra.mxu0 0.0
    %272 = vmatprep.subr.mxu0 0.0
    %273 = vmatpush1.msra.mxu0 0.0
    %274 = vmatprep.subr.mxu0 0.0
    %275 = vmatpush1.msra.mxu0 0.0
    %276 = vmatprep.subr.mxu0 0.0
    %277 = vmatpush1.msra.mxu0 0.0
    %278 = vmatprep.subr.mxu0 0.0
    %279 = vmatpush1.msra.mxu0 0.0
    %280 = vmatprep.subr.mxu0 0.0
    %281 = vmatpush1.msra.mxu0 0.0
    %282 = vmatprep.mubr.f32.mxu0 0.0
    %283 = vmatmul.mubr.f32.gmra.mrb[0].mxu0 %v60
    %v284 = vpop.f32.mrb[0].mxu0
    %v285 = vadd.f32 %v138, %v284
    %v286 = vpop.f32.mrb[0].mxu0
    %v287 = vadd.f32 %v142, %v286
    %288 = vdwg.mxu0
    %v289 = vmax.f32 %v214, 0.0
    %v290 = vmax.f32 %v216, 0.0
    %v291 = vmax.f32 %v285, 0.0
    %v292 = vmax.f32 %v287, 0.0
    %v293 = vld [vmem:[#allocation7] sm:$0xff]
    %v294 = vld [vmem:[#allocation7 + $0x8] sm:$0xff]
    %v295 = vld [vmem:[#allocation7 + $0x10] sm:$0xff]
    %v296 = vld [vmem:[#allocation7 + $0x18] sm:$0xff]
    %v297 = vld [vmem:[#allocation7 + $0x20] sm:$0xff]
    %v298 = vld [vmem:[#allocation7 + $0x28] sm:$0xff]
    %v299 = vld [vmem:[#allocation7 + $0x30] sm:$0xff]
    %v300 = vld [vmem:[#allocation7 + $0x38] sm:$0xff]
    %v301 = vld [vmem:[#allocation7 + $0x40] sm:$0xff]
    %v302 = vld [vmem:[#allocation7 + $0x48] sm:$0xff]
    %v303 = vld [vmem:[#allocation7 + $0x50] sm:$0xff]
    %v304 = vld [vmem:[#allocation7 + $0x58] sm:$0xff]
    %v305 = vld [vmem:[#allocation7 + $0x60] sm:$0xff]
    %v306 = vld [vmem:[#allocation7 + $0x68] sm:$0xff]
    %v307 = vld [vmem:[#allocation7 + $0x70] sm:$0xff]
    %v308 = vld [vmem:[#allocation7 + $0x78] sm:$0xff]
    %v309 = vld [vmem:[#allocation7 + $0x80] sm:$0xff]
    %v310 = vld [vmem:[#allocation7 + $0x88] sm:$0xff]
    %v311 = vld [vmem:[#allocation7 + $0x90] sm:$0xff]
    %v312 = vld [vmem:[#allocation7 + $0x98] sm:$0xff]
    %v313 = vld [vmem:[#allocation7 + $0xa0] sm:$0xff]
    %v314 = vld [vmem:[#allocation7 + $0xa8] sm:$0xff]
    %v315 = vld [vmem:[#allocation7 + $0xb0] sm:$0xff]
    %v316 = vld [vmem:[#allocation7 + $0xb8] sm:$0xff]
    %v317 = vld [vmem:[#allocation7 + $0xc0] sm:$0xff]
    %v318 = vld [vmem:[#allocation7 + $0xc8] sm:$0xff]
    %v319 = vld [vmem:[#allocation7 + $0xd0] sm:$0xff]
    %v320 = vld [vmem:[#allocation7 + $0xd8] sm:$0xff]
    %v321 = vld [vmem:[#allocation7 + $0xe0] sm:$0xff]
    %v322 = vld [vmem:[#allocation7 + $0xe8] sm:$0xff]
    %v323 = vld [vmem:[#allocation7 + $0xf0] sm:$0xff]
    %v324 = vld [vmem:[#allocation7 + $0xf8] sm:$0xff]
    %v325 = vld [vmem:[#allocation7 + $0x100] sm:$0xff]
    %v326 = vld [vmem:[#allocation7 + $0x108] sm:$0xff]
    %v327 = vld [vmem:[#allocation7 + $0x110] sm:$0xff]
    %v328 = vld [vmem:[#allocation7 + $0x118] sm:$0xff]
    %v329 = vld [vmem:[#allocation7 + $0x120] sm:$0xff]
    %v330 = vld [vmem:[#allocation7 + $0x128] sm:$0xff]
    %v331 = vld [vmem:[#allocation7 + $0x130] sm:$0xff]
    %v332 = vld [vmem:[#allocation7 + $0x138] sm:$0xff]
    %v333 = vld [vmem:[#allocation7 + $0x140] sm:$0xff]
    %v334 = vld [vmem:[#allocation7 + $0x148] sm:$0xff]
    %v335 = vld [vmem:[#allocation7 + $0x150] sm:$0xff]
    %v336 = vld [vmem:[#allocation7 + $0x158] sm:$0xff]
    %v337 = vld [vmem:[#allocation7 + $0x160] sm:$0xff]
    %v338 = vld [vmem:[#allocation7 + $0x168] sm:$0xff]
    %v339 = vld [vmem:[#allocation7 + $0x170] sm:$0xff]
    %v340 = vld [vmem:[#allocation7 + $0x178] sm:$0xff]
    %v341 = vld [vmem:[#allocation7 + $0x180] sm:$0xff]
    %v342 = vld [vmem:[#allocation7 + $0x188] sm:$0xff]
    %v343 = vld [vmem:[#allocation7 + $0x190] sm:$0xff]
    %v344 = vld [vmem:[#allocation7 + $0x198] sm:$0xff]
    %v345 = vld [vmem:[#allocation7 + $0x1a0] sm:$0xff]
    %v346 = vld [vmem:[#allocation7 + $0x1a8] sm:$0xff]
    %v347 = vld [vmem:[#allocation7 + $0x1b0] sm:$0xff]
    %v348 = vld [vmem:[#allocation7 + $0x1b8] sm:$0xff]
    %v349 = vld [vmem:[#allocation7 + $0x1c0] sm:$0xff]
    %v350 = vld [vmem:[#allocation7 + $0x1c8] sm:$0xff]
    %v351 = vld [vmem:[#allocation7 + $0x1d0] sm:$0xff]
    %v352 = vld [vmem:[#allocation7 + $0x1d8] sm:$0xff]
    %v353 = vld [vmem:[#allocation7 + $0x1e0] sm:$0xff]
    %v354 = vld [vmem:[#allocation7 + $0x1e8] sm:$0xff]
    %v355 = vld [vmem:[#allocation7 + $0x1f0] sm:$0xff]
    %v356 = vld [vmem:[#allocation7 + $0x1f8] sm:$0xff]
    %v357 = vld [vmem:[#allocation7 + $0x200] sm:$0xff]
    %v358 = vld [vmem:[#allocation7 + $0x208] sm:$0xff]
    %v359 = vld [vmem:[#allocation7 + $0x210] sm:$0xff]
    %v360 = vld [vmem:[#allocation7 + $0x218] sm:$0xff]
    %v361 = vld [vmem:[#allocation7 + $0x220] sm:$0xff]
    %v362 = vld [vmem:[#allocation7 + $0x228] sm:$0xff]
    %v363 = vld [vmem:[#allocation7 + $0x230] sm:$0xff]
    %v364 = vld [vmem:[#allocation7 + $0x238] sm:$0xff]
    %v365 = vld [vmem:[#allocation7 + $0x240] sm:$0xff]
    %v366 = vld [vmem:[#allocation7 + $0x248] sm:$0xff]
    %v367 = vld [vmem:[#allocation7 + $0x250] sm:$0xff]
    %v368 = vld [vmem:[#allocation7 + $0x258] sm:$0xff]
    %v369 = vld [vmem:[#allocation7 + $0x260] sm:$0xff]
    %v370 = vld [vmem:[#allocation7 + $0x268] sm:$0xff]
    %v371 = vld [vmem:[#allocation7 + $0x270] sm:$0xff]
    %v372 = vld [vmem:[#allocation7 + $0x278] sm:$0xff]
    %v373 = vld [vmem:[#allocation7 + $0x280] sm:$0xff]
    %v374 = vld [vmem:[#allocation7 + $0x288] sm:$0xff]
    %v375 = vld [vmem:[#allocation7 + $0x290] sm:$0xff]
    %v376 = vld [vmem:[#allocation7 + $0x298] sm:$0xff]
    %v377 = vld [vmem:[#allocation7 + $0x2a0] sm:$0xff]
    %v378 = vld [vmem:[#allocation7 + $0x2a8] sm:$0xff]
    %v379 = vld [vmem:[#allocation7 + $0x2b0] sm:$0xff]
    %v380 = vld [vmem:[#allocation7 + $0x2b8] sm:$0xff]
    %v381 = vld [vmem:[#allocation7 + $0x2c0] sm:$0xff]
    %v382 = vld [vmem:[#allocation7 + $0x2c8] sm:$0xff]
    %v383 = vld [vmem:[#allocation7 + $0x2d0] sm:$0xff]
    %v384 = vld [vmem:[#allocation7 + $0x2d8] sm:$0xff]
    %v385 = vld [vmem:[#allocation7 + $0x2e0] sm:$0xff]
    %v386 = vld [vmem:[#allocation7 + $0x2e8] sm:$0xff]
    %v387 = vld [vmem:[#allocation7 + $0x2f0] sm:$0xff]
    %v388 = vld [vmem:[#allocation7 + $0x2f8] sm:$0xff]
    %v389 = vld [vmem:[#allocation7 + $0x300] sm:$0xff]
    %v390 = vld [vmem:[#allocation7 + $0x308] sm:$0xff]
    %v391 = vld [vmem:[#allocation7 + $0x310] sm:$0xff]
    %v392 = vld [vmem:[#allocation7 + $0x318] sm:$0xff]
    %v393 = vld [vmem:[#allocation7 + $0x320] sm:$0xff]
    %v394 = vld [vmem:[#allocation7 + $0x328] sm:$0xff]
    %v395 = vld [vmem:[#allocation7 + $0x330] sm:$0xff]
    %v396 = vld [vmem:[#allocation7 + $0x338] sm:$0xff]
    %v397 = vld [vmem:[#allocation7 + $0x340] sm:$0xff]
    %v398 = vld [vmem:[#allocation7 + $0x348] sm:$0xff]
    %v399 = vld [vmem:[#allocation7 + $0x350] sm:$0xff]
    %v400 = vld [vmem:[#allocation7 + $0x358] sm:$0xff]
    %v401 = vld [vmem:[#allocation7 + $0x360] sm:$0xff]
    %v402 = vld [vmem:[#allocation7 + $0x368] sm:$0xff]
    %v403 = vld [vmem:[#allocation7 + $0x370] sm:$0xff]
    %v404 = vld [vmem:[#allocation7 + $0x378] sm:$0xff]
    %v405 = vld [vmem:[#allocation7 + $0x380] sm:$0xff]
    %v406 = vld [vmem:[#allocation7 + $0x388] sm:$0xff]
    %v407 = vld [vmem:[#allocation7 + $0x390] sm:$0xff]
    %v408 = vld [vmem:[#allocation7 + $0x398] sm:$0xff]
    %v409 = vld [vmem:[#allocation7 + $0x3a0] sm:$0xff]
    %v410 = vld [vmem:[#allocation7 + $0x3a8] sm:$0xff]
    %v411 = vld [vmem:[#allocation7 + $0x3b0] sm:$0xff]
    %v412 = vld [vmem:[#allocation7 + $0x3b8] sm:$0xff]
    %v413 = vld [vmem:[#allocation7 + $0x3c0] sm:$0xff]
    %v414 = vld [vmem:[#allocation7 + $0x3c8] sm:$0xff]
    %v415 = vld [vmem:[#allocation7 + $0x3d0] sm:$0xff]
    %v416 = vld [vmem:[#allocation7 + $0x3d8] sm:$0xff]
    %v417 = vld [vmem:[#allocation7 + $0x3e0] sm:$0xff]
    %v418 = vld [vmem:[#allocation7 + $0x3e8] sm:$0xff]
    %v419 = vld [vmem:[#allocation7 + $0x3f0] sm:$0xff]
    %v420 = vld [vmem:[#allocation7 + $0x3f8] sm:$0xff]
    %v421 = vld [vmem:[%s4] sm:$0x3]
    %v423 = vlaneseq
    %v424 = vshrl.u32 %v423, 7
    %v425 = vsub.s32 0, %v424
    %v426 = vrot.slane %v421, %v425
    %v427 = vlaneseq
    %v428 = vshrl.u32 %v427, 7
    %v429 = vsub.s32 1, %v428
    %v430 = vrot.slane %v421, %v429
    %433 = vmatprep.subr.mxu0 %v294
    %434 = vmatpush1.msra.mxu0 %v293
    %435 = vmatprep.subr.mxu0 %v296
    %436 = vmatpush1.msra.mxu0 %v295
    %437 = vmatprep.subr.mxu0 %v298
    %438 = vmatpush1.msra.mxu0 %v297
    %439 = vmatprep.subr.mxu0 %v300
    %440 = vmatpush1.msra.mxu0 %v299
    %441 = vmatprep.subr.mxu0 %v302
    %442 = vmatpush1.msra.mxu0 %v301
    %443 = vmatprep.subr.mxu0 %v304
    %444 = vmatpush1.msra.mxu0 %v303
    %445 = vmatprep.subr.mxu0 %v306
    %446 = vmatpush1.msra.mxu0 %v305
    %447 = vmatprep.subr.mxu0 %v308
    %448 = vmatpush1.msra.mxu0 %v307
    %449 = vmatprep.subr.mxu0 %v310
    %450 = vmatpush1.msra.mxu0 %v309
    %451 = vmatprep.subr.mxu0 %v312
    %452 = vmatpush1.msra.mxu0 %v311
    %453 = vmatprep.subr.mxu0 %v314
    %454 = vmatpush1.msra.mxu0 %v313
    %455 = vmatprep.subr.mxu0 %v316
    %456 = vmatpush1.msra.mxu0 %v315
    %457 = vmatprep.subr.mxu0 %v318
    %458 = vmatpush1.msra.mxu0 %v317
    %459 = vmatprep.subr.mxu0 %v320
    %460 = vmatpush1.msra.mxu0 %v319
    %461 = vmatprep.subr.mxu0 %v322
    %462 = vmatpush1.msra.mxu0 %v321
    %463 = vmatprep.subr.mxu0 %v324
    %464 = vmatpush1.msra.mxu0 %v323
    %465 = vmatprep.subr.mxu0 %v326
    %466 = vmatpush1.msra.mxu0 %v325
    %467 = vmatprep.subr.mxu0 %v328
    %468 = vmatpush1.msra.mxu0 %v327
    %469 = vmatprep.subr.mxu0 %v330
    %470 = vmatpush1.msra.mxu0 %v329
    %471 = vmatprep.subr.mxu0 %v332
    %472 = vmatpush1.msra.mxu0 %v331
    %473 = vmatprep.subr.mxu0 %v334
    %474 = vmatpush1.msra.mxu0 %v333
    %475 = vmatprep.subr.mxu0 %v336
    %476 = vmatpush1.msra.mxu0 %v335
    %477 = vmatprep.subr.mxu0 %v338
    %478 = vmatpush1.msra.mxu0 %v337
    %479 = vmatprep.subr.mxu0 %v340
    %480 = vmatpush1.msra.mxu0 %v339
    %481 = vmatprep.subr.mxu0 %v342
    %482 = vmatpush1.msra.mxu0 %v341
    %483 = vmatprep.subr.mxu0 %v344
    %484 = vmatpush1.msra.mxu0 %v343
    %485 = vmatprep.subr.mxu0 %v346
    %486 = vmatpush1.msra.mxu0 %v345
    %487 = vmatprep.subr.mxu0 %v348
    %488 = vmatpush1.msra.mxu0 %v347
    %489 = vmatprep.subr.mxu0 %v350
    %490 = vmatpush1.msra.mxu0 %v349
    %491 = vmatprep.subr.mxu0 %v352
    %492 = vmatpush1.msra.mxu0 %v351
    %493 = vmatprep.subr.mxu0 %v354
    %494 = vmatpush1.msra.mxu0 %v353
    %495 = vmatprep.subr.mxu0 %v356
    %496 = vmatpush1.msra.mxu0 %v355
    %497 = vmatprep.mubr.f32.mxu0 %v290
    %498 = vmatmul.mubr.f32.gmra.mrb[0].mxu0 %v289
    %v499 = vpop.f32.mrb[0].mxu0
    %v500 = vadd.f32 %v426, %v499
    %v501 = vpop.f32.mrb[0].mxu0
    %v502 = vadd.f32 %v430, %v501
    %503 = vdwg.mxu0
    %504 = vmatprep.subr.mxu0 %v358
    %505 = vmatpush1.msra.mxu0 %v357
    %506 = vmatprep.subr.mxu0 %v360
    %507 = vmatpush1.msra.mxu0 %v359
    %508 = vmatprep.subr.mxu0 %v362
    %509 = vmatpush1.msra.mxu0 %v361
    %510 = vmatprep.subr.mxu0 %v364
    %511 = vmatpush1.msra.mxu0 %v363
    %512 = vmatprep.subr.mxu0 %v366
    %513 = vmatpush1.msra.mxu0 %v365
    %514 = vmatprep.subr.mxu0 %v368
    %515 = vmatpush1.msra.mxu0 %v367
    %516 = vmatprep.subr.mxu0 %v370
    %517 = vmatpush1.msra.mxu0 %v369
    %518 = vmatprep.subr.mxu0 %v372
    %519 = vmatpush1.msra.mxu0 %v371
    %520 = vmatprep.subr.mxu0 %v374
    %521 = vmatpush1.msra.mxu0 %v373
    %522 = vmatprep.subr.mxu0 %v376
    %523 = vmatpush1.msra.mxu0 %v375
    %524 = vmatprep.subr.mxu0 %v378
    %525 = vmatpush1.msra.mxu0 %v377
    %526 = vmatprep.subr.mxu0 %v380
    %527 = vmatpush1.msra.mxu0 %v379
    %528 = vmatprep.subr.mxu0 %v382
    %529 = vmatpush1.msra.mxu0 %v381
    %530 = vmatprep.subr.mxu0 %v384
    %531 = vmatpush1.msra.mxu0 %v383
    %532 = vmatprep.subr.mxu0 %v386
    %533 = vmatpush1.msra.mxu0 %v385
    %534 = vmatprep.subr.mxu0 %v388
    %535 = vmatpush1.msra.mxu0 %v387
    %536 = vmatprep.subr.mxu0 %v390
    %537 = vmatpush1.msra.mxu0 %v389
    %538 = vmatprep.subr.mxu0 %v392
    %539 = vmatpush1.msra.mxu0 %v391
    %540 = vmatprep.subr.mxu0 %v394
    %541 = vmatpush1.msra.mxu0 %v393
    %542 = vmatprep.subr.mxu0 %v396
    %543 = vmatpush1.msra.mxu0 %v395
    %544 = vmatprep.subr.mxu0 %v398
    %545 = vmatpush1.msra.mxu0 %v397
    %546 = vmatprep.subr.mxu0 %v400
    %547 = vmatpush1.msra.mxu0 %v399
    %548 = vmatprep.subr.mxu0 %v402
    %549 = vmatpush1.msra.mxu0 %v401
    %550 = vmatprep.subr.mxu0 %v404
    %551 = vmatpush1.msra.mxu0 %v403
    %552 = vmatprep.subr.mxu0 %v406
    %553 = vmatpush1.msra.mxu0 %v405
    %554 = vmatprep.subr.mxu0 %v408
    %555 = vmatpush1.msra.mxu0 %v407
    %556 = vmatprep.subr.mxu0 %v410
    %557 = vmatpush1.msra.mxu0 %v409
    %558 = vmatprep.subr.mxu0 %v412
    %559 = vmatpush1.msra.mxu0 %v411
    %560 = vmatprep.subr.mxu0 %v414
    %561 = vmatpush1.msra.mxu0 %v413
    %562 = vmatprep.subr.mxu0 %v416
    %563 = vmatpush1.msra.mxu0 %v415
    %564 = vmatprep.subr.mxu0 %v418
    %565 = vmatpush1.msra.mxu0 %v417
    %566 = vmatprep.subr.mxu0 %v420
    %567 = vmatpush1.msra.mxu0 %v419
    %568 = vmatprep.mubr.f32.mxu0 %v292
    %569 = vmatmul.mubr.f32.gmra.mrb[0].mxu0 %v291
    %v570 = vpop.f32.mrb[0].mxu0
    %v571 = vadd.f32 %v500, %v570
    %v572 = vpop.f32.mrb[0].mxu0
    %v573 = vadd.f32 %v502, %v572
    %574 = vdwg.mxu0
    %575 = vst [vmem:[#allocation8] sm:$0xff] %v571
    %576 = vst [vmem:[#allocation8 + $0x8] sm:$0xff] %v573
    // Predicated region
    $region34: #{tpu_custom_call.1} parent=1 // pred_check
      _
    $region35: #{tpu_custom_call.1} parent=1 // pred_check_branch
      %578 = sbr.rel (0) target = $region37
    $region36: #{tpu_custom_call.1} parent=1 // pred_region
      %s580 = ssub.s32 256, 256
      %581 = vsyncadd [#allocation4], %s580
      %s583 = sshll.u32 [#allocation8], 4
      %s584 = int_to_ptr.vmem [resolvable:$true] %s583
      %586 = dma.vmem_to_hbm [thread:$0]  %s584, 256, %s5, [#allocation4]
    $region37: #{tpu_custom_call.1} parent=1 // pred_fallthru
      _
    // Predicated region
    $region38: #{tpu_custom_call.1} parent=1 // pred_check
      _
    $region39: #{tpu_custom_call.1} parent=1 // pred_check_branch
      %588 = sbr.rel (0) target = $region41
    $region40: #{tpu_custom_call.1} parent=1 // pred_region
      %589 = dma.done [#allocation4], 256
    $region41: #{tpu_custom_call.1} parent=1 // pred_fallthru
      _
    %590 = vsyncpa [#allocation3], 1
    %591 = vsyncpa [#allocation6], 1
    %592 = vsyncpa [#allocation4], 1

</llo_original>
